<compile_context>
chip_gen: v5e
topology: v5e:2x2
jax: 0.10.0
libtpu: 0.0.40
codegen_flags: <defaults>
</compile_context>

<pallas_src>
import jax
import jax.numpy as jnp
import numpy as np
from jax import lax
from jax.experimental import pallas as pl
from jax.experimental.pallas import tpu as pltpu

BN_EPS = 1e-5
LANES = 128


def _round_up(x, m):
    return (x + m - 1) // m * m


def _pick_tile_m(M, cap=512):
    """Large row tile, but keep >=2 tiles so both v7x TensorCores get work."""
    half = _round_up(max((M + 1) // 2, 8), 8)
    return min(cap, half)


def _vmem_limit(buffer_bytes):
    """Generous double-buffered budget, capped at v7x physical VMEM."""
    return int(min(64 * 2**20, max(4 * buffer_bytes, 16 * 2**20)))


def _conv_stats_kernel(patch_ref, w_ref, psum_ref):
    """Pass 1 (stats only): one MXU contraction per row tile; per-channel sum / sumsq.

    Only rows 0 and 1 of the (8, Cp) stats block are written; rows 2..7 are never read.
    """
    acc = jnp.dot(patch_ref[...], w_ref[...], preferred_element_type=jnp.float32)
    psum_ref[0:1, :] = jnp.sum(acc, axis=0, keepdims=True)
    psum_ref[1:2, :] = jnp.sum(acc * acc, axis=0, keepdims=True)


def _conv_bn_silu_kernel(patch_ref, w_ref, scale_ref, shift_ref, o_ref):
    """Pass 2: recompute the conv matmul, fused BN affine (scale/shift) + exact SiLU."""
    acc = jnp.dot(patch_ref[...], w_ref[...], preferred_element_type=jnp.float32)
    y = acc * scale_ref[...] + shift_ref[...]
    sig = 1.0 / (1.0 + jnp.exp(-y))          # exact sigmoid (no approx reciprocal)
    o_ref[...] = (y * sig).astype(o_ref.dtype)


def conv_bn_silu(x_nchw, weight, bias, gamma, beta, *, stride=1, padding=0,
                 tile_m=None, matmul_dtype=jnp.bfloat16):
    """Forward pass of ConvBnSiLu. x_nchw: (N, Cin, H, W), weight: (Cout, Cin, K, K)."""
    del bias  # Conv bias cancels exactly under train-mode BatchNorm (mean & variance).
    N, Cin, H, W = x_nchw.shape
    Cout, _, K, _ = weight.shape
    Ho = (H + 2 * padding - K) // stride + 1
    Wo = (W + 2 * padding - K) // stride + 1

    M = N * Ho * Wo
    Kc = K * K * Cin

    itemsize = jnp.dtype(matmul_dtype).itemsize
    sublane_pack = 8 * (4 // itemsize)          # 8 for f32, 16 for bf16
    Kc_pad = _round_up(Kc, sublane_pack)        # pad contraction dim only to pack size
    Cp = _round_up(Cout, LANES)                 # lane-dense output channels
    if tile_m is None:
        tile_m = _pick_tile_m(M)
    M_pad = _round_up(M, tile_m)
    num_tiles = M_pad // tile_m

    # ---- glue (plain JAX): NCHW->NHWC, cast to matmul dtype early (halves im2col HBM
    #      bytes), spatial pad, im2col, zero-pad to tiles ----
    x = jnp.transpose(x_nchw, (0, 2, 3, 1)).astype(matmul_dtype)
    x = jnp.pad(x, ((0, 0), (padding, padding), (padding, padding), (0, 0)))
    taps = []
    for kh in range(K):
        for kw in range(K):
            taps.append(x[:, kh:kh + Ho * stride:stride, kw:kw + Wo * stride:stride, :])
    patch = jnp.stack(taps, axis=3).reshape(M, Kc)                      # (M, K*K*Cin)
    patch = jnp.pad(patch, ((0, M_pad - M), (0, Kc_pad - Kc)))

    w = jnp.transpose(weight, (2, 3, 1, 0)).reshape(Kc, Cout).astype(matmul_dtype)
    w = jnp.pad(w, ((0, Kc_pad - Kc), (0, Cp - Cout)))

    buf1 = tile_m * Kc_pad * itemsize + Kc_pad * Cp * itemsize + 8 * Cp * 4
    buf2 = tile_m * Kc_pad * itemsize + Kc_pad * Cp * itemsize + 2 * Cp * 4 \
        + tile_m * Cp * 4

    # ---- pass 1: per-tile conv matmul + per-channel statistics (no conv HBM output) ----
    psums = pl.pallas_call(
        _conv_stats_kernel,
        grid=(num_tiles,),
        in_specs=[
            pl.BlockSpec((tile_m, Kc_pad), lambda i: (i, 0)),
            pl.BlockSpec((Kc_pad, Cp), lambda i: (0, 0)),   # weight resident in VMEM
        ],
        out_specs=pl.BlockSpec((8, Cp), lambda i: (i, 0)),
        out_shape=jax.ShapeDtypeStruct((num_tiles * 8, Cp), jnp.float32),
        compiler_params=pltpu.CompilerParams(
            dimension_semantics=("parallel",),
            vmem_limit_bytes=_vmem_limit(buf1)),
    )(patch, w)

    # ---- tiny cross-tile BN reduction + affine fusion (O(Cout) work, plain JAX) ----
    stats = psums.reshape(num_tiles, 8, Cp)[:, :2, :].sum(axis=0)       # (2, Cp)
    mean = stats[0] / M
    var = jnp.maximum(stats[1] / M - mean * mean, 0.0)   # biased var, clamped >= 0
    gamma_p = jnp.pad(gamma.astype(jnp.float32), (0, Cp - Cout))
    beta_p = jnp.pad(beta.astype(jnp.float32), (0, Cp - Cout))
    scale = (gamma_p * lax.rsqrt(var + BN_EPS)).reshape(1, Cp)
    shift = (beta_p - mean * scale[0]).reshape(1, Cp)

    # ---- pass 2: recompute matmul (Kc_pad << 2*Cp, cheaper than conv HBM round-trip),
    #      fused scale/shift + SiLU, lane-dense (tile_m, Cp) stores ----
    out = pl.pallas_call(
        _conv_bn_silu_kernel,
        grid=(num_tiles,),
        in_specs=[
            pl.BlockSpec((tile_m, Kc_pad), lambda i: (i, 0)),
            pl.BlockSpec((Kc_pad, Cp), lambda i: (0, 0)),
            pl.BlockSpec((1, Cp), lambda i: (0, 0)),
            pl.BlockSpec((1, Cp), lambda i: (0, 0)),
        ],
        out_specs=pl.BlockSpec((tile_m, Cp), lambda i: (i, 0)),
        out_shape=jax.ShapeDtypeStruct((M_pad, Cp), jnp.float32),
        compiler_params=pltpu.CompilerParams(
            dimension_semantics=("parallel",),
            vmem_limit_bytes=_vmem_limit(buf2)),
    )(patch, w, scale, shift)

    out = out[:M, :Cout].reshape(N, Ho, Wo, Cout)
    return jnp.transpose(out, (0, 3, 1, 2))   # back to PyTorch NCHW


def _reference(x_nchw, weight, bias, gamma, beta, *, stride, padding):
    """Pure-JAX f32 reference (same semantics as torch: Conv2d -> BN(train) -> SiLU)."""
    x = x_nchw.astype(jnp.float32)
    conv = lax.conv_general_dilated(
        x, weight.astype(jnp.float32),
        window_strides=(stride, stride),
        padding=((padding, padding), (padding, padding)),
        dimension_numbers=("NCHW", "OIHW", "NCHW"),
    ) + bias.reshape(1, -1, 1, 1)
    mean = jnp.mean(conv, axis=(0, 2, 3), keepdims=True)
    var = jnp.mean((conv - mean) ** 2, axis=(0, 2, 3), keepdims=True)
    xhat = (conv - mean) / jnp.sqrt(var + BN_EPS)
    y = xhat * gamma.reshape(1, -1, 1, 1) + beta.reshape(1, -1, 1, 1)
    return y * jax.nn.sigmoid(y)


if __name__ == "__main__":
    # Module config: ConvBnSiLu(in_channels=4, out_channels=8, kernel_size=3, stride=1, padding=1)
    in_channels, out_channels, kernel_size, stride, padding = 4, 8, 3, 1, 1
    N, H, W = 2, 16, 16

    key = jax.random.PRNGKey(0)
    kx, kw, kb = jax.random.split(key, 3)

    x = jax.random.normal(kx, (N, in_channels, H, W), dtype=jnp.float32)

    # Deterministic parameter init (shapes match nn.Conv2d / nn.BatchNorm2d).
    fan_in = in_channels * kernel_size * kernel_size
    bound = 1.0 / np.sqrt(fan_in)
    weight = jax.random.uniform(kw, (out_channels, in_channels, kernel_size, kernel_size),
                                minval=-bound, maxval=bound, dtype=jnp.float32)
    bias = jax.random.uniform(kb, (out_channels,), minval=-bound, maxval=bound,
                              dtype=jnp.float32)
    gamma = jnp.ones((out_channels,), dtype=jnp.float32)   # BN weight init
    beta = jnp.zeros((out_channels,), dtype=jnp.float32)   # BN bias init

    out = conv_bn_silu(x, weight, bias, gamma, beta, stride=stride, padding=padding)
    out = jax.block_until_ready(out)

    ref = _reference(x, weight, bias, gamma, beta, stride=stride, padding=padding)
    # Tolerance accounts for bf16 matmul inputs (accumulation is f32); SiLU itself is
    # computed with an exact f32 sigmoid.
    np.testing.assert_allclose(np.asarray(out), np.asarray(ref), rtol=2e-2, atol=2e-2)

    print("KERNEL_OK")
</pallas_src>

<mosaic_0001>
module attributes {stable_mosaic.version = 11 : i64} {
  func.func @_conv_stats_kernel(%arg0: i32, %arg1: memref<256x48xbf16, #tpu.memory_space<vmem>>, %arg2: memref<48x128xbf16, #tpu.memory_space<vmem>>, %arg3: memref<8x128xf32, #tpu.memory_space<vmem>>) attributes {dimension_semantics = [#tpu.dimension_semantics<parallel>], iteration_bounds = array<i64: 2>, scalar_prefetch = 0 : i64, scratch_operands = 0 : i64, tpu.core_type = #tpu.core_type<tc>, window_params = [{transform_indices = @transform_0, window_bounds = array<i64: 256, 48>}, {pipeline_mode = #tpu.pipeline_mode<synchronous>, transform_indices = @transform_1, window_bounds = array<i64: 48, 128>}, {transform_indices = @transform_2, window_bounds = array<i64: 8, 128>}]} {
    %c0 = arith.constant 0 : index
    %c0_0 = arith.constant 0 : index
    %0 = vector.load %arg1[%c0, %c0_0] : memref<256x48xbf16, #tpu.memory_space<vmem>>, vector<256x48xbf16>
    %c0_1 = arith.constant 0 : index
    %c0_2 = arith.constant 0 : index
    %1 = vector.load %arg2[%c0_1, %c0_2] : memref<48x128xbf16, #tpu.memory_space<vmem>>, vector<48x128xbf16>
    %cst = arith.constant dense<0.000000e+00> : vector<256x128xf32>
    %2 = tpu.matmul %0, %1, %cst {dimension_numbers = #tpu.dot_dimension_numbers<[1], [0], [0], [1], [0, 0, 1, 1], [], []>} : vector<256x48xbf16>, vector<48x128xbf16>, vector<256x128xf32> -> vector<256x128xf32>
    %cst_3 = arith.constant dense<0.000000e+00> : vector<128xf32>
    %3 = vector.multi_reduction <add>, %2, %cst_3 [0] : vector<256x128xf32> to vector<128xf32>
    %4 = vector.shape_cast %3 : vector<128xf32> to vector<1x128xf32>
    %c0_4 = arith.constant 0 : index
    %c0_5 = arith.constant 0 : index
    %5 = vector.load %arg3[%c0_4, %c0_5] : memref<8x128xf32, #tpu.memory_space<vmem>>, vector<1x128xf32>
    tpu.vector_store %arg3[%c0_4, %c0_5], %4 {strides = array<i32>} : memref<8x128xf32, #tpu.memory_space<vmem>>, vector<1x128xf32>,
    %6 = arith.mulf %2, %2 : vector<256x128xf32>
    %cst_6 = arith.constant dense<0.000000e+00> : vector<128xf32>
    %7 = vector.multi_reduction <add>, %6, %cst_6 [0] : vector<256x128xf32> to vector<128xf32>
    %8 = vector.shape_cast %7 : vector<128xf32> to vector<1x128xf32>
    %c1 = arith.constant 1 : index
    %c0_7 = arith.constant 0 : index
    %9 = vector.load %arg3[%c1, %c0_7] : memref<8x128xf32, #tpu.memory_space<vmem>>, vector<1x128xf32>
    tpu.vector_store %arg3[%c1, %c0_7], %8 {strides = array<i32>} : memref<8x128xf32, #tpu.memory_space<vmem>>, vector<1x128xf32>,
    return
  }
  func.func @transform_0(%arg0: i32) -> (i32, i32) {
    %c0_i32 = arith.constant 0 : i32
    %c0_i32_0 = arith.constant 0 : i32
    return %arg0, %c0_i32 : i32, i32
  }
  func.func @transform_1(%arg0: i32) -> (i32, i32) {
    %c0_i32 = arith.constant 0 : i32
    %c0_i32_0 = arith.constant 0 : i32
    %c0_i32_1 = arith.constant 0 : i32
    return %c0_i32, %c0_i32_0 : i32, i32
  }
  func.func @transform_2(%arg0: i32) -> (i32, i32) {
    %c0_i32 = arith.constant 0 : i32
    %c0_i32_0 = arith.constant 0 : i32
    return %arg0, %c0_i32 : i32, i32
  }
}

</mosaic_0001>

<llo_original>
// kernel: tpu_custom_call.1
$region0: #{tpu_custom_call.1}
  #allocation0 [shape = 'u32[]', space=smem, size = 0x4, offset = 0x4, fixed_abs, tag = 'smem constant byte address 0x4 - core index']
  #allocation1 [shape = 'u32[72,128]{1,0:T(1,128)}', space=vmem, size = 0x9000, scoped, tag = 'internal scratch']
  %s0 = inlined_call_operand.vmem [shape: bf16[512,48], index: 0, kind: input, shape index: {}]
  %s1 = inlined_call_operand.vmem [shape: bf16[48,128], index: 1, kind: input, shape index: {}]
  %s2 = inlined_call_operand.hbm [shape: f32[16,128], index: 2, kind: output, shape index: {}]
  %s3 = sld [smem:[#allocation0]]
  $region41: #{tpu_custom_call.1} parent=0
    _
  %s5 = ssub.s32 1, %s3
  %s6 = scalar_select 0, %s5, %s3
  $region1: #{tpu_custom_call.1} parent=0
    #allocation2 [shape = 'u8[8192]{0}', space=vmem, size = 0x2000, scoped, tag = 'output window, operand 0']
    #allocation3 [shape = 's32[2]{0}', space=sflag, size = 0x8, scoped, tag = 'scoped memory for tpu_custom_call.1']
    %7 = vsyncpa [#allocation3], 0
    %s8 = scalar_lea.sflag [#allocation3], 1
    %9 = vsyncpa %s8, 0
    loop: start=0, step=1, limit=4
    $region2: #{tpu_custom_call.1} parent=1 // loop_pre_header
      _
    $region3: #{tpu_custom_call.1} parent=1 // loop_header
      %s11 = sphi 0, %s15
      %p12 = scmp.ge.s32.totalorder %s11, 4
      %s21 = sphi 0, %s23
      %s24 = sphi 0, %s21
      %s25 = sphi 0, %s24
      %s41 = sphi 0, %s25
      %s45 = sphi 0, %s45
      %s47 = sphi 0, %s45
      %s48 = sphi 0, %s47
      %s62 = sphi 0, %s48
      %s68 = sphi 0, %s70
      %s71 = sphi 0, %s68
      %s72 = sphi 0, %s71
      %s88 = sphi 0, %s72
    $region4: #{tpu_custom_call.1} parent=1 // loop_header_branch
      %14 = sbr.rel (%p12) target = $region8
    $region5: #{tpu_custom_call.1} parent=1 // loop_body
      %s16 = ssub.s32 %s11, 1
      %s17 = ssub.s32 %s11, 2
      %s18 = sadd.s32 %s11, 1
      %s19 = ssub.s32 %s11, %s18
      %p20 = scmp.eq.s32.totalorder %s19, 0
      %s22 = sadd.s32 %s21, 1
      %s23 = scalar_select %p20, %s21, %s22
      %p26 = pneg %p20
      %p27 = scmp.eq.s32.totalorder %s11, 1
      %p28 = por %p26, %p27
      %p29 = scmp.ne.s32.totalorder %s21, %s24
      %p30 = scmp.eq.s32.totalorder %s11, 0
      %p31 = por %p29, %p30
      %p32 = scmp.ne.s32.totalorder %s21, %s24
      %p33 = scmp.eq.s32.totalorder %s16, 1
      %p34 = por %p32, %p33
      %p35 = scmp.ne.s32.totalorder %s24, %s25
      %p36 = scmp.eq.s32.totalorder %s16, 0
      %p37 = por %p35, %p36
      %p38 = scmp.ne.s32.totalorder %s24, %s25
      %p39 = scmp.eq.s32.totalorder %s17, 1
      %p40 = por %p38, %p39
      %p42 = scmp.ne.s32.totalorder %s25, %s41
      %p43 = scmp.eq.s32.totalorder %s17, 0
      %p44 = por %p42, %p43
      %s46 = sadd.s32 %s45, 1
      %p49 = scmp.eq.s32.totalorder %s11, 1
      %p50 = scmp.ne.s32.totalorder %s45, %s47
      %p51 = scmp.eq.s32.totalorder %s11, 0
      %p52 = por %p50, %p51
      %p53 = scmp.ne.s32.totalorder %s45, %s47
      %p54 = scmp.eq.s32.totalorder %s16, 1
      %p55 = por %p53, %p54
      %p56 = scmp.ne.s32.totalorder %s47, %s48
      %p57 = scmp.eq.s32.totalorder %s16, 0
      %p58 = por %p56, %p57
      %p59 = scmp.ne.s32.totalorder %s47, %s48
      %p60 = scmp.eq.s32.totalorder %s17, 1
      %p61 = por %p59, %p60
      %p63 = scmp.ne.s32.totalorder %s48, %s62
      %p64 = scmp.eq.s32.totalorder %s17, 0
      %p65 = por %p63, %p64
      %s66 = ssub.s32 %s11, %s18
      %p67 = scmp.eq.s32.totalorder %s66, 0
      %s69 = sadd.s32 %s68, 1
      %s70 = scalar_select %p67, %s68, %s69
      %p73 = pneg %p67
      %p74 = scmp.eq.s32.totalorder %s11, 1
      %p75 = por %p73, %p74
      %p76 = scmp.ne.s32.totalorder %s68, %s71
      %p77 = scmp.eq.s32.totalorder %s11, 0
      %p78 = por %p76, %p77
      %p79 = scmp.ne.s32.totalorder %s68, %s71
      %p80 = scmp.eq.s32.totalorder %s16, 1
      %p81 = por %p79, %p80
      %p82 = scmp.ne.s32.totalorder %s71, %s72
      %p83 = scmp.eq.s32.totalorder %s16, 0
      %p84 = por %p82, %p83
      %p85 = scmp.ne.s32.totalorder %s71, %s72
      %p86 = scmp.eq.s32.totalorder %s17, 1
      %p87 = por %p85, %p86
      %p89 = scmp.ne.s32.totalorder %s72, %s88
      %p90 = scmp.eq.s32.totalorder %s17, 0
      %p91 = por %p89, %p90
      %p92 = scmp.le.s32.totalorder 1, %s11
      %p93 = scmp.lt.s32.totalorder %s11, 3
      %p94 = pnand %p92, %p93
      %p95 = pneg %p94
      // Predicated region
      $region9: #{tpu_custom_call.1} parent=5 // pred_check
        _
      $region10: #{tpu_custom_call.1} parent=5 // pred_check_branch
        %97 = sbr.rel (%p94) target = $region12
      $region11: #{tpu_custom_call.1} parent=5 // pred_region
        %s98 = ssub.s32 %s11, 1
        // Predicated region
        $region13: #{tpu_custom_call.1} parent=11 // pred_check
          %p99 = pneg %p58
        $region14: #{tpu_custom_call.1} parent=11 // pred_check_branch
          %101 = sbr.rel (%p99) target = $region16
        $region15: #{tpu_custom_call.1} parent=11 // pred_region
          _
        $region16: #{tpu_custom_call.1} parent=11 // pred_fallthru
          _
      $region12: #{tpu_custom_call.1} parent=5 // pred_fallthru
        _
      %p102 = scmp.lt.s32.totalorder %s11, 2
      // Predicated region
      $region17: #{tpu_custom_call.1} parent=5 // pred_check
        %p103 = pneg %p102
      $region18: #{tpu_custom_call.1} parent=5 // pred_check_branch
        %105 = sbr.rel (%p103) target = $region20
      $region19: #{tpu_custom_call.1} parent=5 // pred_region
        // Predicated region
        $region21: #{tpu_custom_call.1} parent=19 // pred_check
          %p106 = pneg %p31
        $region22: #{tpu_custom_call.1} parent=19 // pred_check_branch
          %108 = sbr.rel (%p106) target = $region24
        $region23: #{tpu_custom_call.1} parent=19 // pred_region
          %s109 = smul.u32 32, %s11
          %p110 = scmp.lt.s32.totalorder %s109, 63
          %s111 = scalar_select %p110, %s109, 63
          %s112 = smul.addr %s111, 4
          %s113 = scalar_lea.vmem %s0, %s112
          %s114 = smul.u32 32, %s11
        $region24: #{tpu_custom_call.1} parent=19 // pred_fallthru
          _
      $region20: #{tpu_custom_call.1} parent=5 // pred_fallthru
        _
      %p115 = scmp.le.s32.totalorder 1, %s11
      %p116 = scmp.lt.s32.totalorder %s11, 3
      %p117 = pnand %p115, %p116
      %p118 = pneg %p117
      // Predicated region
      $region25: #{tpu_custom_call.1} parent=5 // pred_check
        _
      $region26: #{tpu_custom_call.1} parent=5 // pred_check_branch
        %120 = sbr.rel (%p117) target = $region28
      $region27: #{tpu_custom_call.1} parent=5 // pred_region
        %s121 = ssub.s32 %s11, 1
        %s122 = smul.u32 32, %s16
        %p123 = scmp.lt.s32.totalorder %s122, 63
        %s124 = scalar_select %p123, %s122, 63
        %s125 = smul.addr %s124, 4
        %s126 = scalar_lea.vmem %s0, %s125
        %p127 = pneg %p37
        %p128 = pneg %p34
        %p129 = pneg %p58
        %p130 = pneg %p55
        %p131 = pneg %p84
        %p132 = pneg %p81
        %s133 = sand.u32 %s71, 1
        %s134 = scalar_lea.sflag [#allocation3], %s133
        %s135 = sand.u32 %s71, 1
        %s136 = smul.addr %s135, 8
        %s137 = scalar_lea.vmem [#allocation2], %s136
        %s138 = smul.u32 32, %s16
        %p139 = scmp.lt.s32.totalorder %s138, 63
        %s140 = scalar_select %p139, %s138, 63
        %s141 = smul.addr %s140, 4
        %s142 = scalar_lea.vmem %s0, %s141
        %s143 = smul.u32 32, %s16
        %v145 = vld [vmem:[%s142] sm:$0xf]
        %v146 = vld [vmem:[%s142 + $0x4] sm:$0xf]
        %v147 = vld [vmem:[%s142 + $0x8] sm:$0xf]
        %v148 = vld [vmem:[%s142 + $0xc] sm:$0xf]
        %v149 = vld [vmem:[%s142 + $0x10] sm:$0xf]
        %v150 = vld [vmem:[%s142 + $0x14] sm:$0xf]
        %v151 = vld [vmem:[%s142 + $0x18] sm:$0xf]
        %v152 = vld [vmem:[%s142 + $0x1c] sm:$0xf]
        %v153 = vld [vmem:[%s142 + $0x20] sm:$0xf]
        %v154 = vld [vmem:[%s142 + $0x24] sm:$0xf]
        %v155 = vld [vmem:[%s142 + $0x28] sm:$0xf]
        %v156 = vld [vmem:[%s142 + $0x2c] sm:$0xf]
        %v157 = vld [vmem:[%s142 + $0x30] sm:$0xf]
        %v158 = vld [vmem:[%s142 + $0x34] sm:$0xf]
        %v159 = vld [vmem:[%s142 + $0x38] sm:$0xf]
        %v160 = vld [vmem:[%s142 + $0x3c] sm:$0xf]
        %v161 = vld [vmem:[%s142 + $0x40] sm:$0xf]
        %v162 = vld [vmem:[%s142 + $0x44] sm:$0xf]
        %v163 = vld [vmem:[%s142 + $0x48] sm:$0xf]
        %v164 = vld [vmem:[%s142 + $0x4c] sm:$0xf]
        %v165 = vld [vmem:[%s142 + $0x50] sm:$0xf]
        %v166 = vld [vmem:[%s142 + $0x54] sm:$0xf]
        %v167 = vld [vmem:[%s142 + $0x58] sm:$0xf]
        %v168 = vld [vmem:[%s142 + $0x5c] sm:$0xf]
        %v169 = vld [vmem:[%s142 + $0x60] sm:$0xf]
        %v170 = vld [vmem:[%s142 + $0x64] sm:$0xf]
        %v171 = vld [vmem:[%s142 + $0x68] sm:$0xf]
        %v172 = vld [vmem:[%s142 + $0x6c] sm:$0xf]
        %v173 = vld [vmem:[%s142 + $0x70] sm:$0xf]
        %v174 = vld [vmem:[%s142 + $0x74] sm:$0xf]
        %v175 = vld [vmem:[%s142 + $0x78] sm:$0xf]
        %v176 = vld [vmem:[%s142 + $0x7c] sm:$0xf]
        %v177 = vld [vmem:[%s1] sm:$0xf]
        %v178 = vld [vmem:[%s1 + $0x4] sm:$0xf]
        %v179 = vld [vmem:[%s1 + $0x8] sm:$0xf]
        %v180 = vld [vmem:[%s1 + $0xc] sm:$0xf]
        %v181 = vld [vmem:[%s1 + $0x10] sm:$0xf]
        %v182 = vld [vmem:[%s1 + $0x14] sm:$0xf]
        %v215 = vunpack.c.l.b16 %v145
        %v216 = vunpack.c.l.b16 %v146
        %v217 = vunpack.c.l.b16 %v147
        %v218 = vunpack.c.l.b16 %v148
        %v219 = vunpack.c.l.b16 %v149
        %v220 = vunpack.c.l.b16 %v150
        %v221 = vunpack.c.l.b16 %v151
        %v222 = vunpack.c.l.b16 %v152
        %v223 = vunpack.c.l.b16 %v153
        %v224 = vunpack.c.l.b16 %v154
        %v225 = vunpack.c.l.b16 %v155
        %v226 = vunpack.c.l.b16 %v156
        %v227 = vunpack.c.l.b16 %v157
        %v228 = vunpack.c.l.b16 %v158
        %v229 = vunpack.c.l.b16 %v159
        %v230 = vunpack.c.l.b16 %v160
        %v231 = vunpack.c.l.b16 %v161
        %v232 = vunpack.c.l.b16 %v162
        %v233 = vunpack.c.l.b16 %v163
        %v234 = vunpack.c.l.b16 %v164
        %v235 = vunpack.c.l.b16 %v165
        %v236 = vunpack.c.l.b16 %v166
        %v237 = vunpack.c.l.b16 %v167
        %v238 = vunpack.c.l.b16 %v168
        %v239 = vunpack.c.l.b16 %v169
        %v240 = vunpack.c.l.b16 %v170
        %v241 = vunpack.c.l.b16 %v171
        %v242 = vunpack.c.l.b16 %v172
        %v243 = vunpack.c.l.b16 %v173
        %v244 = vunpack.c.l.b16 %v174
        %v245 = vunpack.c.l.b16 %v175
        %v246 = vunpack.c.l.b16 %v176
        %v247 = vpack.c.b16 %v216, %v215
        %v248 = vpack.c.b16 %v218, %v217
        %v249 = vpack.c.b16 %v220, %v219
        %v250 = vpack.c.b16 %v222, %v221
        %v251 = vpack.c.b16 %v224, %v223
        %v252 = vpack.c.b16 %v226, %v225
        %v253 = vpack.c.b16 %v228, %v227
        %v254 = vpack.c.b16 %v230, %v229
        %v255 = vpack.c.b16 %v232, %v231
        %v256 = vpack.c.b16 %v234, %v233
        %v257 = vpack.c.b16 %v236, %v235
        %v258 = vpack.c.b16 %v238, %v237
        %v259 = vpack.c.b16 %v240, %v239
        %v260 = vpack.c.b16 %v242, %v241
        %v261 = vpack.c.b16 %v244, %v243
        %v262 = vpack.c.b16 %v246, %v245
        %v269 = vunpack.c.l.b16 %v177
        %v270 = vunpack.c.l.b16 %v178
        %v271 = vunpack.c.l.b16 %v179
        %v272 = vunpack.c.l.b16 %v180
        %v273 = vunpack.c.l.b16 %v181
        %v274 = vunpack.c.l.b16 %v182
        %v275 = vpack.c.b16 %v270, %v269
        %v276 = vpack.c.b16 %v272, %v271
        %v277 = vpack.c.b16 %v274, %v273
        %vm281 = vcmask 392192
        %v283 = vsel %vm281, %v247, 0
        %v286 = vsel %vm281, %v248, 0
        %v289 = vsel %vm281, %v249, 0
        %v292 = vsel %vm281, %v250, 0
        %v295 = vsel %vm281, %v251, 0
        %v298 = vsel %vm281, %v252, 0
        %v301 = vsel %vm281, %v253, 0
        %v304 = vsel %vm281, %v254, 0
        %v307 = vsel %vm281, %v255, 0
        %v310 = vsel %vm281, %v256, 0
        %v313 = vsel %vm281, %v257, 0
        %v316 = vsel %vm281, %v258, 0
        %v319 = vsel %vm281, %v259, 0
        %v322 = vsel %vm281, %v260, 0
        %v325 = vsel %vm281, %v261, 0
        %v328 = vsel %vm281, %v262, 0
        %330 = vmatpush.bf16.msra.mxu0 0
        %331 = vmatpush.bf16.msra.mxu0 0
        %332 = vmatpush.bf16.msra.mxu0 0
        %333 = vmatpush.bf16.msra.mxu0 0
        %334 = vmatpush.bf16.msra.mxu0 0
        %335 = vmatpush.bf16.msra.mxu0 %v277
        %336 = vmatpush.bf16.msra.mxu0 %v276
        %337 = vmatpush.bf16.msra.mxu0 %v275
        %338 = vmatmul.bf16.gmra.mxu0 %v283
        %v339 = vpop.f32.mrf.mxu0
        %v340 = vadd.f32 0.0, %v339
        %v341 = vpop.f32.mrf.mxu0
        %v342 = vadd.f32 0.0, %v341
        %343 = vmatmul.bf16.gmra.mxu0 %v286
        %v344 = vpop.f32.mrf.mxu0
        %v345 = vadd.f32 0.0, %v344
        %v346 = vpop.f32.mrf.mxu0
        %v347 = vadd.f32 0.0, %v346
        %348 = vmatmul.bf16.gmra.mxu0 %v289
        %v349 = vpop.f32.mrf.mxu0
        %v350 = vadd.f32 0.0, %v349
        %v351 = vpop.f32.mrf.mxu0
        %v352 = vadd.f32 0.0, %v351
        %353 = vmatmul.bf16.gmra.mxu0 %v292
        %v354 = vpop.f32.mrf.mxu0
        %v355 = vadd.f32 0.0, %v354
        %v356 = vpop.f32.mrf.mxu0
        %v357 = vadd.f32 0.0, %v356
        %358 = vmatmul.bf16.gmra.mxu0 %v295
        %v359 = vpop.f32.mrf.mxu0
        %v360 = vadd.f32 0.0, %v359
        %v361 = vpop.f32.mrf.mxu0
        %v362 = vadd.f32 0.0, %v361
        %363 = vmatmul.bf16.gmra.mxu0 %v298
        %v364 = vpop.f32.mrf.mxu0
        %v365 = vadd.f32 0.0, %v364
        %v366 = vpop.f32.mrf.mxu0
        %v367 = vadd.f32 0.0, %v366
        %368 = vmatmul.bf16.gmra.mxu0 %v301
        %v369 = vpop.f32.mrf.mxu0
        %v370 = vadd.f32 0.0, %v369
        %v371 = vpop.f32.mrf.mxu0
        %v372 = vadd.f32 0.0, %v371
        %373 = vmatmul.bf16.gmra.mxu0 %v304
        %v374 = vpop.f32.mrf.mxu0
        %v375 = vadd.f32 0.0, %v374
        %v376 = vpop.f32.mrf.mxu0
        %v377 = vadd.f32 0.0, %v376
        %378 = vmatmul.bf16.gmra.mxu0 %v307
        %v379 = vpop.f32.mrf.mxu0
        %v380 = vadd.f32 0.0, %v379
        %v381 = vpop.f32.mrf.mxu0
        %v382 = vadd.f32 0.0, %v381
        %383 = vmatmul.bf16.gmra.mxu0 %v310
        %v384 = vpop.f32.mrf.mxu0
        %v385 = vadd.f32 0.0, %v384
        %v386 = vpop.f32.mrf.mxu0
        %v387 = vadd.f32 0.0, %v386
        %388 = vmatmul.bf16.gmra.mxu0 %v313
        %v389 = vpop.f32.mrf.mxu0
        %v390 = vadd.f32 0.0, %v389
        %v391 = vpop.f32.mrf.mxu0
        %v392 = vadd.f32 0.0, %v391
        %393 = vmatmul.bf16.gmra.mxu0 %v316
        %v394 = vpop.f32.mrf.mxu0
        %v395 = vadd.f32 0.0, %v394
        %v396 = vpop.f32.mrf.mxu0
        %v397 = vadd.f32 0.0, %v396
        %398 = vmatmul.bf16.gmra.mxu0 %v319
        %v399 = vpop.f32.mrf.mxu0
        %v400 = vadd.f32 0.0, %v399
        %v401 = vpop.f32.mrf.mxu0
        %v402 = vadd.f32 0.0, %v401
        %403 = vmatmul.bf16.gmra.mxu0 %v322
        %v404 = vpop.f32.mrf.mxu0
        %v405 = vadd.f32 0.0, %v404
        %v406 = vpop.f32.mrf.mxu0
        %v407 = vadd.f32 0.0, %v406
        %408 = vmatmul.bf16.gmra.mxu0 %v325
        %v409 = vpop.f32.mrf.mxu0
        %v410 = vadd.f32 0.0, %v409
        %v411 = vpop.f32.mrf.mxu0
        %v412 = vadd.f32 0.0, %v411
        %413 = vmatmul.bf16.gmra.mxu0 %v328
        %v414 = vpop.f32.mrf.mxu0
        %v415 = vadd.f32 0.0, %v414
        %v416 = vpop.f32.mrf.mxu0
        %v417 = vadd.f32 0.0, %v416
        %418 = vdwg.mxu0
        %v419 = vadd.f32 %v340, %v342
        %v420 = vadd.f32 %v419, %v345
        %v421 = vadd.f32 %v420, %v347
        %v422 = vadd.f32 %v421, %v350
        %v423 = vadd.f32 %v422, %v352
        %v424 = vadd.f32 %v423, %v355
        %v425 = vadd.f32 %v424, %v357
        %v426 = vadd.f32 %v425, %v360
        %v427 = vadd.f32 %v426, %v362
        %v428 = vadd.f32 %v427, %v365
        %v429 = vadd.f32 %v428, %v367
        %v430 = vadd.f32 %v429, %v370
        %v431 = vadd.f32 %v430, %v372
        %v432 = vadd.f32 %v431, %v375
        %v433 = vadd.f32 %v432, %v377
        %v434 = vadd.f32 %v433, %v380
        %v435 = vadd.f32 %v434, %v382
        %v436 = vadd.f32 %v435, %v385
        %v437 = vadd.f32 %v436, %v387
        %v438 = vadd.f32 %v437, %v390
        %v439 = vadd.f32 %v438, %v392
        %v440 = vadd.f32 %v439, %v395
        %v441 = vadd.f32 %v440, %v397
        %v442 = vadd.f32 %v441, %v400
        %v443 = vadd.f32 %v442, %v402
        %v444 = vadd.f32 %v443, %v405
        %v445 = vadd.f32 %v444, %v407
        %v446 = vadd.f32 %v445, %v410
        %v447 = vadd.f32 %v446, %v412
        %v448 = vadd.f32 %v447, %v415
        %v449 = vadd.f32 %v448, %v417
        %v450 = vrot.slane %v449, 4
        %v451 = vadd.f32 %v449, %v450
        %v452 = vrot.slane %v451, 2
        %v453 = vadd.f32 %v451, %v452
        %v454 = vrot.slane %v453, 1
        %v455 = vadd.f32 %v453, %v454
        %456 = vst [vmem:[%s137] sm:$0x1] %v455
        %v457 = vmul.f32 %v340, %v340
        %v458 = vmul.f32 %v342, %v342
        %v459 = vmul.f32 %v345, %v345
        %v460 = vmul.f32 %v347, %v347
        %v461 = vmul.f32 %v350, %v350
        %v462 = vmul.f32 %v352, %v352
        %v463 = vmul.f32 %v355, %v355
        %v464 = vmul.f32 %v357, %v357
        %v465 = vmul.f32 %v360, %v360
        %v466 = vmul.f32 %v362, %v362
        %v467 = vmul.f32 %v365, %v365
        %v468 = vmul.f32 %v367, %v367
        %v469 = vmul.f32 %v370, %v370
        %v470 = vmul.f32 %v372, %v372
        %v471 = vmul.f32 %v375, %v375
        %v472 = vmul.f32 %v377, %v377
        %v473 = vmul.f32 %v380, %v380
        %v474 = vmul.f32 %v382, %v382
        %v475 = vmul.f32 %v385, %v385
        %v476 = vmul.f32 %v387, %v387
        %v477 = vmul.f32 %v390, %v390
        %v478 = vmul.f32 %v392, %v392
        %v479 = vmul.f32 %v395, %v395
        %v480 = vmul.f32 %v397, %v397
        %v481 = vmul.f32 %v400, %v400
        %v482 = vmul.f32 %v402, %v402
        %v483 = vmul.f32 %v405, %v405
        %v484 = vmul.f32 %v407, %v407
        %v485 = vmul.f32 %v410, %v410
        %v486 = vmul.f32 %v412, %v412
        %v487 = vmul.f32 %v415, %v415
        %v488 = vmul.f32 %v417, %v417
        %v489 = vadd.f32 %v457, %v458
        %v490 = vadd.f32 %v489, %v459
        %v491 = vadd.f32 %v490, %v460
        %v492 = vadd.f32 %v491, %v461
        %v493 = vadd.f32 %v492, %v462
        %v494 = vadd.f32 %v493, %v463
        %v495 = vadd.f32 %v494, %v464
        %v496 = vadd.f32 %v495, %v465
        %v497 = vadd.f32 %v496, %v466
        %v498 = vadd.f32 %v497, %v467
        %v499 = vadd.f32 %v498, %v468
        %v500 = vadd.f32 %v499, %v469
        %v501 = vadd.f32 %v500, %v470
        %v502 = vadd.f32 %v501, %v471
        %v503 = vadd.f32 %v502, %v472
        %v504 = vadd.f32 %v503, %v473
        %v505 = vadd.f32 %v504, %v474
        %v506 = vadd.f32 %v505, %v475
        %v507 = vadd.f32 %v506, %v476
        %v508 = vadd.f32 %v507, %v477
        %v509 = vadd.f32 %v508, %v478
        %v510 = vadd.f32 %v509, %v479
        %v511 = vadd.f32 %v510, %v480
        %v512 = vadd.f32 %v511, %v481
        %v513 = vadd.f32 %v512, %v482
        %v514 = vadd.f32 %v513, %v483
        %v515 = vadd.f32 %v514, %v484
        %v516 = vadd.f32 %v515, %v485
        %v517 = vadd.f32 %v516, %v486
        %v518 = vadd.f32 %v517, %v487
        %v519 = vadd.f32 %v518, %v488
        %v520 = vrot.slane %v519, 4
        %v521 = vadd.f32 %v519, %v520
        %v522 = vrot.slane %v521, 2
        %v523 = vadd.f32 %v521, %v522
        %v524 = vrot.slane %v523, 1
        %v525 = vadd.f32 %v523, %v524
        %526 = vst [vmem:[%s137 + $0x1] sm:$0x1] %v525
        %s527 = sand.u32 %s71, 1
        %s528 = scalar_lea.sflag [#allocation3], %s527
        %s529 = sand.u32 %s71, 1
        %s530 = smul.addr %s529, 8
        %s531 = scalar_lea.vmem [#allocation2], %s530
        // Predicated region
        $region29: #{tpu_custom_call.1} parent=27 // pred_check
          %p532 = pneg %p81
        $region30: #{tpu_custom_call.1} parent=27 // pred_check_branch
          %534 = sbr.rel (%p532) target = $region32
        $region31: #{tpu_custom_call.1} parent=27 // pred_region
          %536 = vsyncadd %s528, 0
          %s537 = smul.addr %s16, 8
          %s538 = scalar_lea.hbm %s2, %s537
          %s540 = sshll.u32 %s531, 4
          %s541 = int_to_ptr.vmem [resolvable:$true] %s540
          %s542 = sshll.u32 %s538, 4
          %s543 = int_to_ptr.hbm [resolvable:$true] %s542
          %545 = dma.vmem_to_hbm [thread:$0]  %s541, 128, %s543, %s528
        $region32: #{tpu_custom_call.1} parent=27 // pred_fallthru
          _
      $region28: #{tpu_custom_call.1} parent=5 // pred_fallthru
        _
      %p546 = scmp.le.s32.totalorder 2, %s11
      // Predicated region
      $region33: #{tpu_custom_call.1} parent=5 // pred_check
        %p547 = pneg %p546
      $region34: #{tpu_custom_call.1} parent=5 // pred_check_branch
        %549 = sbr.rel (%p547) target = $region36
      $region35: #{tpu_custom_call.1} parent=5 // pred_region
        %s550 = ssub.s32 %s11, 2
        // Predicated region
        $region37: #{tpu_custom_call.1} parent=35 // pred_check
          %p551 = pneg %p87
        $region38: #{tpu_custom_call.1} parent=35 // pred_check_branch
          %553 = sbr.rel (%p551) target = $region40
        $region39: #{tpu_custom_call.1} parent=35 // pred_region
          %s554 = sand.u32 %s72, 1
          %s555 = scalar_lea.sflag [#allocation3], %s554
          %s556 = sand.u32 %s72, 1
          %s557 = smul.addr %s556, 8
          %s558 = scalar_lea.vmem [#allocation2], %s557
          %560 = dma.done %s555, 128
        $region40: #{tpu_custom_call.1} parent=35 // pred_fallthru
          _
      $region36: #{tpu_custom_call.1} parent=5 // pred_fallthru
        _
    $region6: #{tpu_custom_call.1} parent=1 // loop_footer
      %s15 = sadd.s32 1, %s11
    $region7: #{tpu_custom_call.1} parent=1 // loop_footer_branch
      %10 = sbr.rel target = $region3
    $region8: #{tpu_custom_call.1} parent=1 // loop_exit
      _
    %561 = vsyncpa [#allocation3], 1
    %s562 = scalar_lea.sflag [#allocation3], 1
    %563 = vsyncpa %s562, 1

</llo_original>
